<compile_context>
chip_gen: v7x
topology: tpu7x:2x2x1
jax: 0.10.0
libtpu: 0.0.40
codegen_flags: <defaults>
</compile_context>

<pallas_src>
import jax
import jax.numpy as jnp
from jax import lax
from jax.experimental import pallas as pl
from jax.experimental.pallas import tpu as pltpu

block_size = 256   # max context (tril buffer size in the PyTorch module)
n_embd = 384
head_size = 64


def _head_kernel(x_ref, w_ref, o_ref):
    """One batch element: fused QKV projection + causal softmax attention."""
    H = o_ref.shape[-1]

    x = x_ref[0]                       # (T, C) bf16
    w = w_ref[...]                     # (C, 3H) bf16

    # Fused K|Q|V projection: single N=3H matmul, f32 accumulation.
    kqv = jnp.dot(x, w, preferred_element_type=jnp.float32)          # (T, 3H) f32
    k = kqv[:, 0 * H:1 * H].astype(jnp.bfloat16)                     # (T, H)
    q = kqv[:, 1 * H:2 * H].astype(jnp.bfloat16)                     # (T, H)
    v = kqv[:, 2 * H:3 * H].astype(jnp.bfloat16)                     # (T, H)

    # Scores q @ k^T without materializing k.T: contract last dims directly.
    # NOTE: the reference module does NOT scale by 1/sqrt(H) — keep that.
    wei = lax.dot_general(q, k,
                          dimension_numbers=(((1,), (1,)), ((), ())),
                          preferred_element_type=jnp.float32)        # (T, T) f32

    T = wei.shape[0]
    row = lax.broadcasted_iota(jnp.int32, (T, T), 0)
    col = lax.broadcasted_iota(jnp.int32, (T, T), 1)
    wei = jnp.where(col <= row, wei, -jnp.inf)      # causal mask (diag always kept)

    # Softmax in f32; reuse `wei` so only one (T, T) buffer stays live.
    m = jnp.max(wei, axis=-1, keepdims=True)
    wei = jnp.exp(wei - m)
    s = jnp.sum(wei, axis=-1, keepdims=True)
    p = (wei * pl.reciprocal(s, approx=True)).astype(jnp.bfloat16)   # (T, T) bf16

    # TODO(synk): training-mode dropout (p=0.2) on attention weights omitted
    #             (eval-mode forward); would use pltpu.prng_seed/prng_random_bits.

    out = jnp.dot(p, v, preferred_element_type=jnp.float32)          # (T, H) f32
    o_ref[0] = out.astype(o_ref.dtype)


def head_forward(x, wk, wq, wv):
    """x: (B, T, C); wk/wq/wv: (C, H). Returns (B, T, H) in x.dtype."""
    B, T, C = x.shape
    H = wk.shape[1]

    # bf16 MXU inputs (accumulation stays f32 inside the kernel).
    x_bf = x.astype(jnp.bfloat16)
    w_kqv = jnp.concatenate([wk, wq, wv], axis=1).astype(jnp.bfloat16)   # (C, 3H)

    flops = 2 * B * T * C * (3 * H) + 4 * B * T * T * H
    bytes_accessed = (x_bf.size * 2) + (w_kqv.size * 2) + B * T * H * x.dtype.itemsize
    cost = pl.CostEstimate(flops=flops,
                           transcendentals=B * T * T,
                           bytes_accessed=bytes_accessed)

    return pl.pallas_call(
        _head_kernel,
        out_shape=jax.ShapeDtypeStruct((B, T, H), x.dtype),
        grid_spec=pltpu.PrefetchScalarGridSpec(
            num_scalar_prefetch=0,
            grid=(B,),
            in_specs=[
                pl.BlockSpec((1, T, C), lambda b: (b, 0, 0)),
                pl.BlockSpec((C, 3 * H), lambda b: (0, 0)),
            ],
            out_specs=pl.BlockSpec((1, T, H), lambda b: (b, 0, 0)),
        ),
        compiler_params=pltpu.CompilerParams(
            dimension_semantics=("parallel",),
        ),
        cost_estimate=cost,
    )(x_bf, w_kqv)


def head_reference_f32(x, wk, wq, wv):
    """Pure-f32 JAX reference mirroring the PyTorch forward (eval mode)."""
    T = x.shape[1]
    k = x @ wk
    q = x @ wq
    v = x @ wv
    wei = q @ jnp.swapaxes(k, -2, -1)
    tril = jnp.tril(jnp.ones((T, T), dtype=bool))
    wei = jnp.where(tril, wei, -jnp.inf)
    wei = jax.nn.softmax(wei, axis=-1)
    return wei @ v


def head_reference_matched(x, wk, wq, wv):
    """Reference that mirrors the kernel's bf16-in / f32-accumulate numerics."""
    H = wk.shape[1]
    T = x.shape[1]
    xb = x.astype(jnp.bfloat16)
    w = jnp.concatenate([wk, wq, wv], axis=1).astype(jnp.bfloat16)
    kqv = jnp.einsum('btc,ch->bth', xb, w, preferred_element_type=jnp.float32)
    k = kqv[..., 0 * H:1 * H].astype(jnp.bfloat16)
    q = kqv[..., 1 * H:2 * H].astype(jnp.bfloat16)
    v = kqv[..., 2 * H:3 * H].astype(jnp.bfloat16)
    wei = jnp.einsum('bqh,bkh->bqk', q, k, preferred_element_type=jnp.float32)
    tril = jnp.tril(jnp.ones((T, T), dtype=bool))
    wei = jnp.where(tril[None], wei, -jnp.inf)
    p = jax.nn.softmax(wei, axis=-1).astype(jnp.bfloat16)
    out = jnp.einsum('bqk,bkh->bqh', p, v, preferred_element_type=jnp.float32)
    return out.astype(x.dtype)


if __name__ == "__main__":
    key = jax.random.PRNGKey(0)
    kx, kk, kq, kv = jax.random.split(key, 4)

    B, T = 2, 128           # T <= block_size
    C, H = n_embd, head_size

    # deterministic inputs / params (PyTorch Linear-style uniform init)
    bound = 1.0 / (C ** 0.5)
    x = jax.random.normal(kx, (B, T, C), dtype=jnp.float32)
    wk = jax.random.uniform(kk, (C, H), minval=-bound, maxval=bound, dtype=jnp.float32)
    wq = jax.random.uniform(kq, (C, H), minval=-bound, maxval=bound, dtype=jnp.float32)
    wv = jax.random.uniform(kv, (C, H), minval=-bound, maxval=bound, dtype=jnp.float32)

    out = jax.block_until_ready(head_forward(x, wk, wq, wv))
    assert out.shape == (B, T, H)

    # Primary check: against a reference with identical bf16/f32 mixed precision.
    ref_m = head_reference_matched(x, wk, wq, wv)
    assert jnp.allclose(out, ref_m, atol=1e-2, rtol=1e-2), "mismatch vs bf16-matched reference"

    # Sanity check: against the full-f32 reference (loose — bf16 MXU inputs).
    ref_f = head_reference_f32(x, wk, wq, wv)
    assert jnp.allclose(out, ref_f, atol=1e-1, rtol=1e-1), "mismatch vs f32 reference"

    print("KERNEL_OK")
</pallas_src>

<mosaic_0001>
module attributes {stable_mosaic.version = 11 : i64} {
  func.func @_head_kernel(%arg0: i32, %arg1: memref<1x128x384xbf16, #tpu.memory_space<vmem>>, %arg2: memref<384x192xbf16, #tpu.memory_space<vmem>>, %arg3: memref<1x128x64xf32, #tpu.memory_space<vmem>>) attributes {dimension_semantics = [#tpu.dimension_semantics<parallel>], iteration_bounds = array<i64: 2>, scalar_prefetch = 0 : i64, scratch_operands = 0 : i64, tpu.core_type = #tpu.core_type<tc>, window_params = [{transform_indices = @transform_0, window_bounds = array<i64: 1, 128, 384>}, {pipeline_mode = #tpu.pipeline_mode<synchronous>, transform_indices = @transform_1, window_bounds = array<i64: 384, 192>}, {transform_indices = @transform_2, window_bounds = array<i64: 1, 128, 64>}]} {
    %c0 = arith.constant 0 : index
    %c0_0 = arith.constant 0 : index
    %c0_1 = arith.constant 0 : index
    %0 = vector.load %arg1[%c0, %c0_0, %c0_1] : memref<1x128x384xbf16, #tpu.memory_space<vmem>>, vector<1x128x384xbf16>
    %1 = vector.shape_cast %0 : vector<1x128x384xbf16> to vector<128x384xbf16>
    %c0_2 = arith.constant 0 : index
    %c0_3 = arith.constant 0 : index
    %2 = vector.load %arg2[%c0_2, %c0_3] : memref<384x192xbf16, #tpu.memory_space<vmem>>, vector<384x192xbf16>
    %cst = arith.constant dense<0.000000e+00> : vector<128x192xf32>
    %3 = tpu.matmul %1, %2, %cst {dimension_numbers = #tpu.dot_dimension_numbers<[1], [0], [0], [1], [0, 0, 1, 1], [], []>} : vector<128x384xbf16>, vector<384x192xbf16>, vector<128x192xf32> -> vector<128x192xf32>
    %4 = vector.extract_strided_slice %3 {offsets = [0, 0], sizes = [128, 64], strides = [1, 1]} : vector<128x192xf32> to vector<128x64xf32>
    %5 = arith.truncf %4 : vector<128x64xf32> to vector<128x64xbf16>
    %6 = vector.extract_strided_slice %3 {offsets = [0, 64], sizes = [128, 64], strides = [1, 1]} : vector<128x192xf32> to vector<128x64xf32>
    %7 = arith.truncf %6 : vector<128x64xf32> to vector<128x64xbf16>
    %8 = vector.extract_strided_slice %3 {offsets = [0, 128], sizes = [128, 64], strides = [1, 1]} : vector<128x192xf32> to vector<128x64xf32>
    %9 = arith.truncf %8 : vector<128x64xf32> to vector<128x64xbf16>
    %cst_4 = arith.constant dense<0.000000e+00> : vector<128x128xf32>
    %10 = tpu.matmul %7, %5, %cst_4 {dimension_numbers = #tpu.dot_dimension_numbers<[1], [1], [0], [0], [0, 0, 1, 0], [], []>} : vector<128x64xbf16>, vector<128x64xbf16>, vector<128x128xf32> -> vector<128x128xf32>
    %11 = tpu.iota {dimensions = array<i32: 0>} : vector<128x128xi32>
    %12 = tpu.iota {dimensions = array<i32: 1>} : vector<128x128xi32>
    %13 = arith.cmpi sle, %12, %11 : vector<128x128xi32>
    %cst_5 = arith.constant 0xFF800000 : f32
    %14 = vector.broadcast %cst_5 : f32 to vector<128x128xf32>
    %15 = arith.select %13, %10, %14 : vector<128x128xi1>, vector<128x128xf32>
    %cst_6 = arith.constant dense<0xFF800000> : vector<128xf32>
    %16 = vector.multi_reduction <maximumf>, %15, %cst_6 [1] : vector<128x128xf32> to vector<128xf32>
    %17 = vector.shape_cast %16 : vector<128xf32> to vector<128x1xf32>
    %18 = vector.broadcast %17 : vector<128x1xf32> to vector<128x128xf32>
    %19 = arith.subf %15, %18 : vector<128x128xf32>
    %20 = math.exp %19 : vector<128x128xf32>
    %cst_7 = arith.constant dense<0.000000e+00> : vector<128xf32>
    %21 = vector.multi_reduction <add>, %20, %cst_7 [1] : vector<128x128xf32> to vector<128xf32>
    %22 = vector.shape_cast %21 : vector<128xf32> to vector<128x1xf32>
    %23 = tpu.reciprocal %22 {approx = true} : vector<128x1xf32> -> vector<128x1xf32>
    %24 = vector.broadcast %23 : vector<128x1xf32> to vector<128x128xf32>
    %25 = arith.mulf %20, %24 : vector<128x128xf32>
    %26 = arith.truncf %25 : vector<128x128xf32> to vector<128x128xbf16>
    %cst_8 = arith.constant dense<0.000000e+00> : vector<128x64xf32>
    %27 = tpu.matmul %26, %9, %cst_8 {dimension_numbers = #tpu.dot_dimension_numbers<[1], [0], [0], [1], [0, 0, 1, 1], [], []>} : vector<128x128xbf16>, vector<128x64xbf16>, vector<128x64xf32> -> vector<128x64xf32>
    %c0_9 = arith.constant 0 : index
    %c0_10 = arith.constant 0 : index
    %c0_11 = arith.constant 0 : index
    %28 = vector.load %arg3[%c0_9, %c0_10, %c0_11] : memref<1x128x64xf32, #tpu.memory_space<vmem>>, vector<1x128x64xf32>
    %29 = vector.shape_cast %28 : vector<1x128x64xf32> to vector<128x64xf32>
    %30 = vector.shape_cast %27 : vector<128x64xf32> to vector<1x128x64xf32>
    tpu.vector_store %arg3[%c0_9, %c0_10, %c0_11], %30 {strides = array<i32>} : memref<1x128x64xf32, #tpu.memory_space<vmem>>, vector<1x128x64xf32>,
    return
  }
  func.func @transform_0(%arg0: i32) -> (i32, i32, i32) {
    %c0_i32 = arith.constant 0 : i32
    %c0_i32_0 = arith.constant 0 : i32
    %c0_i32_1 = arith.constant 0 : i32
    return %arg0, %c0_i32, %c0_i32_0 : i32, i32, i32
  }
  func.func @transform_1(%arg0: i32) -> (i32, i32) {
    %c0_i32 = arith.constant 0 : i32
    %c0_i32_0 = arith.constant 0 : i32
    %c0_i32_1 = arith.constant 0 : i32
    return %c0_i32, %c0_i32_0 : i32, i32
  }
  func.func @transform_2(%arg0: i32) -> (i32, i32, i32) {
    %c0_i32 = arith.constant 0 : i32
    %c0_i32_0 = arith.constant 0 : i32
    %c0_i32_1 = arith.constant 0 : i32
    return %arg0, %c0_i32, %c0_i32_0 : i32, i32, i32
  }
}

</mosaic_0001>

<llo_original>
// kernel: tpu_custom_call.1
$region0: #{tpu_custom_call.1}
  #allocation0 [shape = 'u32[]', space=smem, size = 0x4, offset = 0x4, fixed_abs, tag = 'smem constant byte address 0x4 - core index']
  #allocation1 [shape = 'u32[144,128]{1,0:T(1,128)}', space=vmem, size = 0x12000, scoped, tag = 'internal scratch']
  %s0 = inlined_call_operand.vmem [shape: bf16[2,128,384], index: 0, kind: input, shape index: {}]
  %s1 = inlined_call_operand.vmem [shape: bf16[384,192], index: 1, kind: input, shape index: {}]
  %s2 = inlined_call_operand.vmem [shape: f32[2,128,64], index: 2, kind: output, shape index: {}]
  %s3 = sld [smem:[#allocation0]]
  $region41: #{tpu_custom_call.1} parent=0
    _
  %s5 = ssub.s32 1, %s3
  %s6 = scalar_select 0, %s5, %s3
  loop: start=0, step=1, limit=4
  $region2: #{tpu_custom_call.1} parent=0 // loop_pre_header
    _
  $region3: #{tpu_custom_call.1} parent=0 // loop_header
    %s8 = sphi 0, %s12
    %p9 = scmp.ge.s32.totalorder %s8, 4
    %s18 = sphi 0, %s20
    %s21 = sphi 0, %s18
    %s22 = sphi 0, %s21
    %s38 = sphi 0, %s22
    %s42 = sphi 0, %s42
    %s44 = sphi 0, %s42
    %s45 = sphi 0, %s44
    %s59 = sphi 0, %s45
    %s65 = sphi 0, %s67
    %s68 = sphi 0, %s65
    %s69 = sphi 0, %s68
    %s85 = sphi 0, %s69
  $region4: #{tpu_custom_call.1} parent=0 // loop_header_branch
    %11 = sbr.rel (%p9) target = $region8
  $region5: #{tpu_custom_call.1} parent=0 // loop_body
    %s13 = ssub.s32 %s8, 1
    %s14 = ssub.s32 %s8, 2
    %s15 = sadd.s32 %s8, 1
    %s16 = ssub.s32 %s8, %s15
    %p17 = scmp.eq.s32.totalorder %s16, 0
    %s19 = sadd.s32 %s18, 1
    %s20 = scalar_select %p17, %s18, %s19
    %p23 = pneg %p17
    %p24 = scmp.eq.s32.totalorder %s8, 1
    %p25 = por %p23, %p24
    %p26 = scmp.ne.s32.totalorder %s18, %s21
    %p27 = scmp.eq.s32.totalorder %s8, 0
    %p28 = por %p26, %p27
    %p29 = scmp.ne.s32.totalorder %s18, %s21
    %p30 = scmp.eq.s32.totalorder %s13, 1
    %p31 = por %p29, %p30
    %p32 = scmp.ne.s32.totalorder %s21, %s22
    %p33 = scmp.eq.s32.totalorder %s13, 0
    %p34 = por %p32, %p33
    %p35 = scmp.ne.s32.totalorder %s21, %s22
    %p36 = scmp.eq.s32.totalorder %s14, 1
    %p37 = por %p35, %p36
    %p39 = scmp.ne.s32.totalorder %s22, %s38
    %p40 = scmp.eq.s32.totalorder %s14, 0
    %p41 = por %p39, %p40
    %s43 = sadd.s32 %s42, 1
    %p46 = scmp.eq.s32.totalorder %s8, 1
    %p47 = scmp.ne.s32.totalorder %s42, %s44
    %p48 = scmp.eq.s32.totalorder %s8, 0
    %p49 = por %p47, %p48
    %p50 = scmp.ne.s32.totalorder %s42, %s44
    %p51 = scmp.eq.s32.totalorder %s13, 1
    %p52 = por %p50, %p51
    %p53 = scmp.ne.s32.totalorder %s44, %s45
    %p54 = scmp.eq.s32.totalorder %s13, 0
    %p55 = por %p53, %p54
    %p56 = scmp.ne.s32.totalorder %s44, %s45
    %p57 = scmp.eq.s32.totalorder %s14, 1
    %p58 = por %p56, %p57
    %p60 = scmp.ne.s32.totalorder %s45, %s59
    %p61 = scmp.eq.s32.totalorder %s14, 0
    %p62 = por %p60, %p61
    %s63 = ssub.s32 %s8, %s15
    %p64 = scmp.eq.s32.totalorder %s63, 0
    %s66 = sadd.s32 %s65, 1
    %s67 = scalar_select %p64, %s65, %s66
    %p70 = pneg %p64
    %p71 = scmp.eq.s32.totalorder %s8, 1
    %p72 = por %p70, %p71
    %p73 = scmp.ne.s32.totalorder %s65, %s68
    %p74 = scmp.eq.s32.totalorder %s8, 0
    %p75 = por %p73, %p74
    %p76 = scmp.ne.s32.totalorder %s65, %s68
    %p77 = scmp.eq.s32.totalorder %s13, 1
    %p78 = por %p76, %p77
    %p79 = scmp.ne.s32.totalorder %s68, %s69
    %p80 = scmp.eq.s32.totalorder %s13, 0
    %p81 = por %p79, %p80
    %p82 = scmp.ne.s32.totalorder %s68, %s69
    %p83 = scmp.eq.s32.totalorder %s14, 1
    %p84 = por %p82, %p83
    %p86 = scmp.ne.s32.totalorder %s69, %s85
    %p87 = scmp.eq.s32.totalorder %s14, 0
    %p88 = por %p86, %p87
    %p89 = scmp.le.s32.totalorder 1, %s8
    %p90 = scmp.lt.s32.totalorder %s8, 3
    %p91 = pnand %p89, %p90
    %p92 = pneg %p91
    // Predicated region
    $region9: #{tpu_custom_call.1} parent=5 // pred_check
      _
    $region10: #{tpu_custom_call.1} parent=5 // pred_check_branch
      %94 = sbr.rel (%p91) target = $region12
    $region11: #{tpu_custom_call.1} parent=5 // pred_region
      %s95 = ssub.s32 %s8, 1
      // Predicated region
      $region13: #{tpu_custom_call.1} parent=11 // pred_check
        %p96 = pneg %p55
      $region14: #{tpu_custom_call.1} parent=11 // pred_check_branch
        %98 = sbr.rel (%p96) target = $region16
      $region15: #{tpu_custom_call.1} parent=11 // pred_region
        _
      $region16: #{tpu_custom_call.1} parent=11 // pred_fallthru
        _
    $region12: #{tpu_custom_call.1} parent=5 // pred_fallthru
      _
    %p99 = scmp.lt.s32.totalorder %s8, 2
    // Predicated region
    $region17: #{tpu_custom_call.1} parent=5 // pred_check
      %p100 = pneg %p99
    $region18: #{tpu_custom_call.1} parent=5 // pred_check_branch
      %102 = sbr.rel (%p100) target = $region20
    $region19: #{tpu_custom_call.1} parent=5 // pred_region
      // Predicated region
      $region21: #{tpu_custom_call.1} parent=19 // pred_check
        %p103 = pneg %p28
      $region22: #{tpu_custom_call.1} parent=19 // pred_check_branch
        %105 = sbr.rel (%p103) target = $region24
      $region23: #{tpu_custom_call.1} parent=19 // pred_region
        %p106 = scmp.lt.s32.totalorder %s8, 1
        %s107 = scalar_select %p106, %s8, 1
        %s108 = smul.addr %s107, 48
        %s109 = smul.addr %s108, 4
        %s110 = scalar_lea.vmem %s0, %s109
      $region24: #{tpu_custom_call.1} parent=19 // pred_fallthru
        _
    $region20: #{tpu_custom_call.1} parent=5 // pred_fallthru
      _
    %p111 = scmp.le.s32.totalorder 1, %s8
    %p112 = scmp.lt.s32.totalorder %s8, 3
    %p113 = pnand %p111, %p112
    %p114 = pneg %p113
    // Predicated region
    $region25: #{tpu_custom_call.1} parent=5 // pred_check
      _
    $region26: #{tpu_custom_call.1} parent=5 // pred_check_branch
      %116 = sbr.rel (%p113) target = $region28
    $region27: #{tpu_custom_call.1} parent=5 // pred_region
      %s117 = ssub.s32 %s8, 1
      %p118 = scmp.lt.s32.totalorder %s13, 1
      %s119 = scalar_select %p118, %s13, 1
      %s120 = smul.addr %s119, 48
      %s121 = smul.addr %s120, 4
      %s122 = scalar_lea.vmem %s0, %s121
      %p123 = pneg %p34
      %p124 = pneg %p31
      %p125 = pneg %p55
      %p126 = pneg %p52
      %p127 = pneg %p81
      %p128 = pneg %p78
      %p129 = scmp.lt.s32.totalorder %s13, 1
      %s130 = scalar_select %p129, %s13, 1
      %s131 = smul.addr %s130, 16
      %s132 = smul.addr %s131, 8
      %s133 = scalar_lea.vmem %s2, %s132
      %p134 = scmp.lt.s32.totalorder %s13, 1
      %s135 = scalar_select %p134, %s13, 1
      %s136 = smul.addr %s135, 48
      %s137 = smul.addr %s136, 4
      %s138 = scalar_lea.vmem %s0, %s137
      %p139 = scmp.lt.s32.totalorder %s13, 1
      %s140 = scalar_select %p139, %s13, 1
      %s141 = smul.addr %s140, 16
      %s142 = smul.addr %s141, 8
      %s143 = scalar_lea.vmem %s2, %s142
      %v145 = vld [vmem:[%s138] sm:$0xff]
      %v146 = vld [vmem:[%s138 + $0x8] sm:$0xf]
      %v147 = vld [vmem:[%s138 + $0xc] sm:$0xff]
      %v148 = vld [vmem:[%s138 + $0x14] sm:$0xf]
      %v149 = vld [vmem:[%s138 + $0x18] sm:$0xff]
      %v150 = vld [vmem:[%s138 + $0x20] sm:$0xf]
      %v151 = vld [vmem:[%s138 + $0x24] sm:$0xff]
      %v152 = vld [vmem:[%s138 + $0x2c] sm:$0xf]
      %v153 = vld [vmem:[%s138 + $0x30] sm:$0xff]
      %v154 = vld [vmem:[%s138 + $0x38] sm:$0xf]
      %v155 = vld [vmem:[%s138 + $0x3c] sm:$0xff]
      %v156 = vld [vmem:[%s138 + $0x44] sm:$0xf]
      %v157 = vld [vmem:[%s138 + $0x48] sm:$0xff]
      %v158 = vld [vmem:[%s138 + $0x50] sm:$0xf]
      %v159 = vld [vmem:[%s138 + $0x54] sm:$0xff]
      %v160 = vld [vmem:[%s138 + $0x5c] sm:$0xf]
      %v161 = vld [vmem:[%s138 + $0x60] sm:$0xff]
      %v162 = vld [vmem:[%s138 + $0x68] sm:$0xf]
      %v163 = vld [vmem:[%s138 + $0x6c] sm:$0xff]
      %v164 = vld [vmem:[%s138 + $0x74] sm:$0xf]
      %v165 = vld [vmem:[%s138 + $0x78] sm:$0xff]
      %v166 = vld [vmem:[%s138 + $0x80] sm:$0xf]
      %v167 = vld [vmem:[%s138 + $0x84] sm:$0xff]
      %v168 = vld [vmem:[%s138 + $0x8c] sm:$0xf]
      %v169 = vld [vmem:[%s138 + $0x90] sm:$0xff]
      %v170 = vld [vmem:[%s138 + $0x98] sm:$0xf]
      %v171 = vld [vmem:[%s138 + $0x9c] sm:$0xff]
      %v172 = vld [vmem:[%s138 + $0xa4] sm:$0xf]
      %v173 = vld [vmem:[%s138 + $0xa8] sm:$0xff]
      %v174 = vld [vmem:[%s138 + $0xb0] sm:$0xf]
      %v175 = vld [vmem:[%s138 + $0xb4] sm:$0xff]
      %v176 = vld [vmem:[%s138 + $0xbc] sm:$0xf]
      %v177 = vld [vmem:[%s1] sm:$0xff]
      %v178 = vld [vmem:[%s1 + $0x8] sm:$0xff]
      %v179 = vld [vmem:[%s1 + $0x10] sm:$0xff]
      %v180 = vld [vmem:[%s1 + $0x18] sm:$0xff]
      %v181 = vld [vmem:[%s1 + $0x20] sm:$0xff]
      %v182 = vld [vmem:[%s1 + $0x28] sm:$0xff]
      %v183 = vld [vmem:[%s1 + $0x30] sm:$0xff]
      %v184 = vld [vmem:[%s1 + $0x38] sm:$0xff]
      %v185 = vld [vmem:[%s1 + $0x40] sm:$0xff]
      %v186 = vld [vmem:[%s1 + $0x48] sm:$0xff]
      %v187 = vld [vmem:[%s1 + $0x50] sm:$0xff]
      %v188 = vld [vmem:[%s1 + $0x58] sm:$0xff]
      %v189 = vld [vmem:[%s1 + $0x60] sm:$0xff]
      %v190 = vld [vmem:[%s1 + $0x68] sm:$0xff]
      %v191 = vld [vmem:[%s1 + $0x70] sm:$0xff]
      %v192 = vld [vmem:[%s1 + $0x78] sm:$0xff]
      %v193 = vld [vmem:[%s1 + $0x80] sm:$0xff]
      %v194 = vld [vmem:[%s1 + $0x88] sm:$0xff]
      %v195 = vld [vmem:[%s1 + $0x90] sm:$0xff]
      %v196 = vld [vmem:[%s1 + $0x98] sm:$0xff]
      %v197 = vld [vmem:[%s1 + $0xa0] sm:$0xff]
      %v198 = vld [vmem:[%s1 + $0xa8] sm:$0xff]
      %v199 = vld [vmem:[%s1 + $0xb0] sm:$0xff]
      %v200 = vld [vmem:[%s1 + $0xb8] sm:$0xff]
      %v201 = vld [vmem:[%s1 + $0xc0] sm:$0xff]
      %v202 = vld [vmem:[%s1 + $0xc8] sm:$0xff]
      %v203 = vld [vmem:[%s1 + $0xd0] sm:$0xff]
      %v204 = vld [vmem:[%s1 + $0xd8] sm:$0xff]
      %v205 = vld [vmem:[%s1 + $0xe0] sm:$0xff]
      %v206 = vld [vmem:[%s1 + $0xe8] sm:$0xff]
      %v207 = vld [vmem:[%s1 + $0xf0] sm:$0xff]
      %v208 = vld [vmem:[%s1 + $0xf8] sm:$0xff]
      %v209 = vld [vmem:[%s1 + $0x100] sm:$0xff]
      %v210 = vld [vmem:[%s1 + $0x108] sm:$0xff]
      %v211 = vld [vmem:[%s1 + $0x110] sm:$0xff]
      %v212 = vld [vmem:[%s1 + $0x118] sm:$0xff]
      %v213 = vld [vmem:[%s1 + $0x120] sm:$0xff]
      %v214 = vld [vmem:[%s1 + $0x128] sm:$0xff]
      %v215 = vld [vmem:[%s1 + $0x130] sm:$0xff]
      %v216 = vld [vmem:[%s1 + $0x138] sm:$0xff]
      %v217 = vld [vmem:[%s1 + $0x140] sm:$0xff]
      %v218 = vld [vmem:[%s1 + $0x148] sm:$0xff]
      %v219 = vld [vmem:[%s1 + $0x150] sm:$0xff]
      %v220 = vld [vmem:[%s1 + $0x158] sm:$0xff]
      %v221 = vld [vmem:[%s1 + $0x160] sm:$0xff]
      %v222 = vld [vmem:[%s1 + $0x168] sm:$0xff]
      %v223 = vld [vmem:[%s1 + $0x170] sm:$0xff]
      %v224 = vld [vmem:[%s1 + $0x178] sm:$0xff]
      %v257 = vunpack.c.l.b16 %v145
      %v258 = vunpack.c.h.b16 %v145
      %v259 = vunpack.c.l.b16 %v146
      %v260 = vunpack.c.l.b16 %v147
      %v261 = vunpack.c.h.b16 %v147
      %v262 = vunpack.c.l.b16 %v148
      %v263 = vunpack.c.l.b16 %v149
      %v264 = vunpack.c.h.b16 %v149
      %v265 = vunpack.c.l.b16 %v150
      %v266 = vunpack.c.l.b16 %v151
      %v267 = vunpack.c.h.b16 %v151
      %v268 = vunpack.c.l.b16 %v152
      %v269 = vunpack.c.l.b16 %v153
      %v270 = vunpack.c.h.b16 %v153
      %v271 = vunpack.c.l.b16 %v154
      %v272 = vunpack.c.l.b16 %v155
      %v273 = vunpack.c.h.b16 %v155
      %v274 = vunpack.c.l.b16 %v156
      %v275 = vunpack.c.l.b16 %v157
      %v276 = vunpack.c.h.b16 %v157
      %v277 = vunpack.c.l.b16 %v158
      %v278 = vunpack.c.l.b16 %v159
      %v279 = vunpack.c.h.b16 %v159
      %v280 = vunpack.c.l.b16 %v160
      %v281 = vunpack.c.l.b16 %v161
      %v282 = vunpack.c.h.b16 %v161
      %v283 = vunpack.c.l.b16 %v162
      %v284 = vunpack.c.l.b16 %v163
      %v285 = vunpack.c.h.b16 %v163
      %v286 = vunpack.c.l.b16 %v164
      %v287 = vunpack.c.l.b16 %v165
      %v288 = vunpack.c.h.b16 %v165
      %v289 = vunpack.c.l.b16 %v166
      %v290 = vunpack.c.l.b16 %v167
      %v291 = vunpack.c.h.b16 %v167
      %v292 = vunpack.c.l.b16 %v168
      %v293 = vunpack.c.l.b16 %v169
      %v294 = vunpack.c.h.b16 %v169
      %v295 = vunpack.c.l.b16 %v170
      %v296 = vunpack.c.l.b16 %v171
      %v297 = vunpack.c.h.b16 %v171
      %v298 = vunpack.c.l.b16 %v172
      %v299 = vunpack.c.l.b16 %v173
      %v300 = vunpack.c.h.b16 %v173
      %v301 = vunpack.c.l.b16 %v174
      %v302 = vunpack.c.l.b16 %v175
      %v303 = vunpack.c.h.b16 %v175
      %v304 = vunpack.c.l.b16 %v176
      %v305 = vpack.c.b16 %v260, %v257
      %v306 = vpack.c.b16 %v261, %v258
      %v307 = vpack.c.b16 %v262, %v259
      %v308 = vpack.c.b16 %v266, %v263
      %v309 = vpack.c.b16 %v267, %v264
      %v310 = vpack.c.b16 %v268, %v265
      %v311 = vpack.c.b16 %v272, %v269
      %v312 = vpack.c.b16 %v273, %v270
      %v313 = vpack.c.b16 %v274, %v271
      %v314 = vpack.c.b16 %v278, %v275
      %v315 = vpack.c.b16 %v279, %v276
      %v316 = vpack.c.b16 %v280, %v277
      %v317 = vpack.c.b16 %v284, %v281
      %v318 = vpack.c.b16 %v285, %v282
      %v319 = vpack.c.b16 %v286, %v283
      %v320 = vpack.c.b16 %v290, %v287
      %v321 = vpack.c.b16 %v291, %v288
      %v322 = vpack.c.b16 %v292, %v289
      %v323 = vpack.c.b16 %v296, %v293
      %v324 = vpack.c.b16 %v297, %v294
      %v325 = vpack.c.b16 %v298, %v295
      %v326 = vpack.c.b16 %v302, %v299
      %v327 = vpack.c.b16 %v303, %v300
      %v328 = vpack.c.b16 %v304, %v301
      %v401 = vunpack.c.l.b16 %v177
      %v402 = vunpack.c.h.b16 %v177
      %v403 = vunpack.c.l.b16 %v178
      %v404 = vunpack.c.h.b16 %v178
      %v405 = vunpack.c.l.b16 %v179
      %v406 = vunpack.c.h.b16 %v179
      %v407 = vunpack.c.l.b16 %v180
      %v408 = vunpack.c.h.b16 %v180
      %v409 = vunpack.c.l.b16 %v181
      %v410 = vunpack.c.h.b16 %v181
      %v411 = vunpack.c.l.b16 %v182
      %v412 = vunpack.c.h.b16 %v182
      %v413 = vunpack.c.l.b16 %v183
      %v414 = vunpack.c.h.b16 %v183
      %v415 = vunpack.c.l.b16 %v184
      %v416 = vunpack.c.h.b16 %v184
      %v417 = vunpack.c.l.b16 %v185
      %v418 = vunpack.c.h.b16 %v185
      %v419 = vunpack.c.l.b16 %v186
      %v420 = vunpack.c.h.b16 %v186
      %v421 = vunpack.c.l.b16 %v187
      %v422 = vunpack.c.h.b16 %v187
      %v423 = vunpack.c.l.b16 %v188
      %v424 = vunpack.c.h.b16 %v188
      %v425 = vunpack.c.l.b16 %v189
      %v426 = vunpack.c.h.b16 %v189
      %v427 = vunpack.c.l.b16 %v190
      %v428 = vunpack.c.h.b16 %v190
      %v429 = vunpack.c.l.b16 %v191
      %v430 = vunpack.c.h.b16 %v191
      %v431 = vunpack.c.l.b16 %v192
      %v432 = vunpack.c.h.b16 %v192
      %v433 = vunpack.c.l.b16 %v193
      %v434 = vunpack.c.h.b16 %v193
      %v435 = vunpack.c.l.b16 %v194
      %v436 = vunpack.c.h.b16 %v194
      %v437 = vunpack.c.l.b16 %v195
      %v438 = vunpack.c.h.b16 %v195
      %v439 = vunpack.c.l.b16 %v196
      %v440 = vunpack.c.h.b16 %v196
      %v441 = vunpack.c.l.b16 %v197
      %v442 = vunpack.c.h.b16 %v197
      %v443 = vunpack.c.l.b16 %v198
      %v444 = vunpack.c.h.b16 %v198
      %v445 = vunpack.c.l.b16 %v199
      %v446 = vunpack.c.h.b16 %v199
      %v447 = vunpack.c.l.b16 %v200
      %v448 = vunpack.c.h.b16 %v200
      %v449 = vunpack.c.l.b16 %v201
      %v450 = vunpack.c.h.b16 %v201
      %v451 = vunpack.c.l.b16 %v202
      %v452 = vunpack.c.h.b16 %v202
      %v453 = vunpack.c.l.b16 %v203
      %v454 = vunpack.c.h.b16 %v203
      %v455 = vunpack.c.l.b16 %v204
      %v456 = vunpack.c.h.b16 %v204
      %v457 = vunpack.c.l.b16 %v205
      %v458 = vunpack.c.h.b16 %v205
      %v459 = vunpack.c.l.b16 %v206
      %v460 = vunpack.c.h.b16 %v206
      %v461 = vunpack.c.l.b16 %v207
      %v462 = vunpack.c.h.b16 %v207
      %v463 = vunpack.c.l.b16 %v208
      %v464 = vunpack.c.h.b16 %v208
      %v465 = vunpack.c.l.b16 %v209
      %v466 = vunpack.c.h.b16 %v209
      %v467 = vunpack.c.l.b16 %v210
      %v468 = vunpack.c.h.b16 %v210
      %v469 = vunpack.c.l.b16 %v211
      %v470 = vunpack.c.h.b16 %v211
      %v471 = vunpack.c.l.b16 %v212
      %v472 = vunpack.c.h.b16 %v212
      %v473 = vunpack.c.l.b16 %v213
      %v474 = vunpack.c.h.b16 %v213
      %v475 = vunpack.c.l.b16 %v214
      %v476 = vunpack.c.h.b16 %v214
      %v477 = vunpack.c.l.b16 %v215
      %v478 = vunpack.c.h.b16 %v215
      %v479 = vunpack.c.l.b16 %v216
      %v480 = vunpack.c.h.b16 %v216
      %v481 = vunpack.c.l.b16 %v217
      %v482 = vunpack.c.h.b16 %v217
      %v483 = vunpack.c.l.b16 %v218
      %v484 = vunpack.c.h.b16 %v218
      %v485 = vunpack.c.l.b16 %v219
      %v486 = vunpack.c.h.b16 %v219
      %v487 = vunpack.c.l.b16 %v220
      %v488 = vunpack.c.h.b16 %v220
      %v489 = vunpack.c.l.b16 %v221
      %v490 = vunpack.c.h.b16 %v221
      %v491 = vunpack.c.l.b16 %v222
      %v492 = vunpack.c.h.b16 %v222
      %v493 = vunpack.c.l.b16 %v223
      %v494 = vunpack.c.h.b16 %v223
      %v495 = vunpack.c.l.b16 %v224
      %v496 = vunpack.c.h.b16 %v224
      %v497 = vpack.c.b16 %v403, %v401
      %v498 = vpack.c.b16 %v404, %v402
      %v499 = vpack.c.b16 %v407, %v405
      %v500 = vpack.c.b16 %v408, %v406
      %v501 = vpack.c.b16 %v411, %v409
      %v502 = vpack.c.b16 %v412, %v410
      %v503 = vpack.c.b16 %v415, %v413
      %v504 = vpack.c.b16 %v416, %v414
      %v505 = vpack.c.b16 %v419, %v417
      %v506 = vpack.c.b16 %v420, %v418
      %v507 = vpack.c.b16 %v423, %v421
      %v508 = vpack.c.b16 %v424, %v422
      %v509 = vpack.c.b16 %v427, %v425
      %v510 = vpack.c.b16 %v428, %v426
      %v511 = vpack.c.b16 %v431, %v429
      %v512 = vpack.c.b16 %v432, %v430
      %v513 = vpack.c.b16 %v435, %v433
      %v514 = vpack.c.b16 %v436, %v434
      %v515 = vpack.c.b16 %v439, %v437
      %v516 = vpack.c.b16 %v440, %v438
      %v517 = vpack.c.b16 %v443, %v441
      %v518 = vpack.c.b16 %v444, %v442
      %v519 = vpack.c.b16 %v447, %v445
      %v520 = vpack.c.b16 %v448, %v446
      %v521 = vpack.c.b16 %v451, %v449
      %v522 = vpack.c.b16 %v452, %v450
      %v523 = vpack.c.b16 %v455, %v453
      %v524 = vpack.c.b16 %v456, %v454
      %v525 = vpack.c.b16 %v459, %v457
      %v526 = vpack.c.b16 %v460, %v458
      %v527 = vpack.c.b16 %v463, %v461
      %v528 = vpack.c.b16 %v464, %v462
      %v529 = vpack.c.b16 %v467, %v465
      %v530 = vpack.c.b16 %v468, %v466
      %v531 = vpack.c.b16 %v471, %v469
      %v532 = vpack.c.b16 %v472, %v470
      %v533 = vpack.c.b16 %v475, %v473
      %v534 = vpack.c.b16 %v476, %v474
      %v535 = vpack.c.b16 %v479, %v477
      %v536 = vpack.c.b16 %v480, %v478
      %v537 = vpack.c.b16 %v483, %v481
      %v538 = vpack.c.b16 %v484, %v482
      %v539 = vpack.c.b16 %v487, %v485
      %v540 = vpack.c.b16 %v488, %v486
      %v541 = vpack.c.b16 %v491, %v489
      %v542 = vpack.c.b16 %v492, %v490
      %v543 = vpack.c.b16 %v495, %v493
      %v544 = vpack.c.b16 %v496, %v494
      %593 = vmatprep.subr.bf16.mxu0 %v498
      %594 = vmatpush1.bf16.msra.mxu0 %v497
      %595 = vmatprep.subr.bf16.mxu0 %v500
      %596 = vmatpush1.bf16.msra.mxu0 %v499
      %597 = vmatprep.subr.bf16.mxu0 %v502
      %598 = vmatpush1.bf16.msra.mxu0 %v501
      %599 = vmatprep.subr.bf16.mxu0 %v504
      %600 = vmatpush1.bf16.msra.mxu0 %v503
      %601 = vmatprep.subr.bf16.mxu0 %v506
      %602 = vmatpush1.bf16.msra.mxu0 %v505
      %603 = vmatprep.subr.bf16.mxu0 %v508
      %604 = vmatpush1.bf16.msra.mxu0 %v507
      %605 = vmatprep.subr.bf16.mxu0 %v510
      %606 = vmatpush1.bf16.msra.mxu0 %v509
      %607 = vmatprep.subr.bf16.mxu0 %v512
      %608 = vmatpush1.bf16.msra.mxu0 %v511
      %609 = vmatprep.subr.bf16.mxu0 %v514
      %610 = vmatpush1.bf16.msra.mxu0 %v513
      %611 = vmatprep.subr.bf16.mxu0 %v516
      %612 = vmatpush1.bf16.msra.mxu0 %v515
      %613 = vmatprep.subr.bf16.mxu0 %v518
      %614 = vmatpush1.bf16.msra.mxu0 %v517
      %615 = vmatprep.subr.bf16.mxu0 %v520
      %616 = vmatpush1.bf16.msra.mxu0 %v519
      %617 = vmatprep.subr.bf16.mxu0 %v522
      %618 = vmatpush1.bf16.msra.mxu0 %v521
      %619 = vmatprep.subr.bf16.mxu0 %v524
      %620 = vmatpush1.bf16.msra.mxu0 %v523
      %621 = vmatprep.subr.bf16.mxu0 %v526
      %622 = vmatpush1.bf16.msra.mxu0 %v525
      %623 = vmatprep.subr.bf16.mxu0 %v528
      %624 = vmatpush1.bf16.msra.mxu0 %v527
      %625 = vmatprep.mubr.bf16.mxu0 %v306
      %626 = vmatmul.mubr.bf16.gmra.mrb[0].mxu0 %v305
      %v627 = vpop.f32.mrb[0].mxu0
      %v628 = vadd.f32 0.0, %v627
      %v629 = vpop.f32.mrb[0].mxu0
      %v630 = vadd.f32 0.0, %v629
      %v631 = vpop.f32.mrb[0].mxu0
      %v632 = vadd.f32 0.0, %v631
      %v633 = vpop.f32.mrb[0].mxu0
      %v634 = vadd.f32 0.0, %v633
      %635 = vmatprep.mubr.bf16.mxu0 %v309
      %636 = vmatmul.mubr.bf16.gmra.mrb[0].mxu0 %v308
      %v637 = vpop.f32.mrb[0].mxu0
      %v638 = vadd.f32 0.0, %v637
      %v639 = vpop.f32.mrb[0].mxu0
      %v640 = vadd.f32 0.0, %v639
      %v641 = vpop.f32.mrb[0].mxu0
      %v642 = vadd.f32 0.0, %v641
      %v643 = vpop.f32.mrb[0].mxu0
      %v644 = vadd.f32 0.0, %v643
      %645 = vmatprep.mubr.bf16.mxu0 %v312
      %646 = vmatmul.mubr.bf16.gmra.mrb[0].mxu0 %v311
      %v647 = vpop.f32.mrb[0].mxu0
      %v648 = vadd.f32 0.0, %v647
      %v649 = vpop.f32.mrb[0].mxu0
      %v650 = vadd.f32 0.0, %v649
      %v651 = vpop.f32.mrb[0].mxu0
      %v652 = vadd.f32 0.0, %v651
      %v653 = vpop.f32.mrb[0].mxu0
      %v654 = vadd.f32 0.0, %v653
      %655 = vmatprep.mubr.bf16.mxu0 %v315
      %656 = vmatmul.mubr.bf16.gmra.mrb[0].mxu0 %v314
      %v657 = vpop.f32.mrb[0].mxu0
      %v658 = vadd.f32 0.0, %v657
      %v659 = vpop.f32.mrb[0].mxu0
      %v660 = vadd.f32 0.0, %v659
      %v661 = vpop.f32.mrb[0].mxu0
      %v662 = vadd.f32 0.0, %v661
      %v663 = vpop.f32.mrb[0].mxu0
      %v664 = vadd.f32 0.0, %v663
      %665 = vmatprep.mubr.bf16.mxu0 %v318
      %666 = vmatmul.mubr.bf16.gmra.mrb[0].mxu0 %v317
      %v667 = vpop.f32.mrb[0].mxu0
      %v668 = vadd.f32 0.0, %v667
      %v669 = vpop.f32.mrb[0].mxu0
      %v670 = vadd.f32 0.0, %v669
      %v671 = vpop.f32.mrb[0].mxu0
      %v672 = vadd.f32 0.0, %v671
      %v673 = vpop.f32.mrb[0].mxu0
      %v674 = vadd.f32 0.0, %v673
      %675 = vmatprep.mubr.bf16.mxu0 %v321
      %676 = vmatmul.mubr.bf16.gmra.mrb[0].mxu0 %v320
      %v677 = vpop.f32.mrb[0].mxu0
      %v678 = vadd.f32 0.0, %v677
      %v679 = vpop.f32.mrb[0].mxu0
      %v680 = vadd.f32 0.0, %v679
      %v681 = vpop.f32.mrb[0].mxu0
      %v682 = vadd.f32 0.0, %v681
      %v683 = vpop.f32.mrb[0].mxu0
      %v684 = vadd.f32 0.0, %v683
      %685 = vmatprep.mubr.bf16.mxu0 %v324
      %686 = vmatmul.mubr.bf16.gmra.mrb[0].mxu0 %v323
      %v687 = vpop.f32.mrb[0].mxu0
      %v688 = vadd.f32 0.0, %v687
      %v689 = vpop.f32.mrb[0].mxu0
      %v690 = vadd.f32 0.0, %v689
      %v691 = vpop.f32.mrb[0].mxu0
      %v692 = vadd.f32 0.0, %v691
      %v693 = vpop.f32.mrb[0].mxu0
      %v694 = vadd.f32 0.0, %v693
      %695 = vmatprep.mubr.bf16.mxu0 %v327
      %696 = vmatmul.mubr.bf16.gmra.mrb[0].mxu0 %v326
      %v697 = vpop.f32.mrb[0].mxu0
      %v698 = vadd.f32 0.0, %v697
      %v699 = vpop.f32.mrb[0].mxu0
      %v700 = vadd.f32 0.0, %v699
      %v701 = vpop.f32.mrb[0].mxu0
      %v702 = vadd.f32 0.0, %v701
      %v703 = vpop.f32.mrb[0].mxu0
      %v704 = vadd.f32 0.0, %v703
      %705 = vdwg.mxu0
      %706 = vmatprep.subr.bf16.mxu0 %v530
      %707 = vmatpush1.bf16.msra.mxu0 %v529
      %708 = vmatprep.subr.bf16.mxu0 %v532
      %709 = vmatpush1.bf16.msra.mxu0 %v531
      %710 = vmatprep.subr.bf16.mxu0 %v534
      %711 = vmatpush1.bf16.msra.mxu0 %v533
      %712 = vmatprep.subr.bf16.mxu0 %v536
      %713 = vmatpush1.bf16.msra.mxu0 %v535
      %714 = vmatprep.subr.bf16.mxu0 %v538
      %715 = vmatpush1.bf16.msra.mxu0 %v537
      %716 = vmatprep.subr.bf16.mxu0 %v540
      %717 = vmatpush1.bf16.msra.mxu0 %v539
      %718 = vmatprep.subr.bf16.mxu0 %v542
      %719 = vmatpush1.bf16.msra.mxu0 %v541
      %720 = vmatprep.subr.bf16.mxu0 %v544
      %721 = vmatpush1.bf16.msra.mxu0 %v543
      %722 = vmatprep.subr.bf16.mxu0 0
      %723 = vmatpush1.bf16.msra.mxu0 0
      %724 = vmatprep.subr.bf16.mxu0 0
      %725 = vmatpush1.bf16.msra.mxu0 0
      %726 = vmatprep.subr.bf16.mxu0 0
      %727 = vmatpush1.bf16.msra.mxu0 0
      %728 = vmatprep.subr.bf16.mxu0 0
      %729 = vmatpush1.bf16.msra.mxu0 0
      %730 = vmatprep.subr.bf16.mxu0 0
      %731 = vmatpush1.bf16.msra.mxu0 0
      %732 = vmatprep.subr.bf16.mxu0 0
      %733 = vmatpush1.bf16.msra.mxu0 0
      %734 = vmatprep.subr.bf16.mxu0 0
      %735 = vmatpush1.bf16.msra.mxu0 0
      %736 = vmatprep.subr.bf16.mxu0 0
      %737 = vmatpush1.bf16.msra.mxu0 0
      %738 = vmatprep.mubr.bf16.mxu0 0
      %739 = vmatmul.mubr.bf16.gmra.mrb[0].mxu0 %v307
      %v740 = vpop.f32.mrb[0].mxu0
      %v741 = vadd.f32 %v628, %v740
      %v742 = vpop.f32.mrb[0].mxu0
      %v743 = vadd.f32 %v630, %v742
      %v744 = vpop.f32.mrb[0].mxu0
      %v745 = vadd.f32 %v632, %v744
      %v746 = vpop.f32.mrb[0].mxu0
      %v747 = vadd.f32 %v634, %v746
      %748 = vmatprep.mubr.bf16.mxu0 0
      %749 = vmatmul.mubr.bf16.gmra.mrb[0].mxu0 %v310
      %v750 = vpop.f32.mrb[0].mxu0
      %v751 = vadd.f32 %v638, %v750
      %v752 = vpop.f32.mrb[0].mxu0
      %v753 = vadd.f32 %v640, %v752
      %v754 = vpop.f32.mrb[0].mxu0
      %v755 = vadd.f32 %v642, %v754
      %v756 = vpop.f32.mrb[0].mxu0
      %v757 = vadd.f32 %v644, %v756
      %758 = vmatprep.mubr.bf16.mxu0 0
      %759 = vmatmul.mubr.bf16.gmra.mrb[0].mxu0 %v313
      %v760 = vpop.f32.mrb[0].mxu0
      %v761 = vadd.f32 %v648, %v760
      %v762 = vpop.f32.mrb[0].mxu0
      %v763 = vadd.f32 %v650, %v762
      %v764 = vpop.f32.mrb[0].mxu0
      %v765 = vadd.f32 %v652, %v764
      %v766 = vpop.f32.mrb[0].mxu0
      %v767 = vadd.f32 %v654, %v766
      %768 = vmatprep.mubr.bf16.mxu0 0
      %769 = vmatmul.mubr.bf16.gmra.mrb[0].mxu0 %v316
      %v770 = vpop.f32.mrb[0].mxu0
      %v771 = vadd.f32 %v658, %v770
      %v772 = vpop.f32.mrb[0].mxu0
      %v773 = vadd.f32 %v660, %v772
      %v774 = vpop.f32.mrb[0].mxu0
      %v775 = vadd.f32 %v662, %v774
      %v776 = vpop.f32.mrb[0].mxu0
      %v777 = vadd.f32 %v664, %v776
      %778 = vmatprep.mubr.bf16.mxu0 0
      %779 = vmatmul.mubr.bf16.gmra.mrb[0].mxu0 %v319
      %v780 = vpop.f32.mrb[0].mxu0
      %v781 = vadd.f32 %v668, %v780
      %v782 = vpop.f32.mrb[0].mxu0
      %v783 = vadd.f32 %v670, %v782
      %v784 = vpop.f32.mrb[0].mxu0
      %v785 = vadd.f32 %v672, %v784
      %v786 = vpop.f32.mrb[0].mxu0
      %v787 = vadd.f32 %v674, %v786
      %788 = vmatprep.mubr.bf16.mxu0 0
      %789 = vmatmul.mubr.bf16.gmra.mrb[0].mxu0 %v322
      %v790 = vpop.f32.mrb[0].mxu0
      %v791 = vadd.f32 %v678, %v790
      %v792 = vpop.f32.mrb[0].mxu0
      %v793 = vadd.f32 %v680, %v792
      %v794 = vpop.f32.mrb[0].mxu0
      %v795 = vadd.f32 %v682, %v794
      %v796 = vpop.f32.mrb[0].mxu0
      %v797 = vadd.f32 %v684, %v796
      %798 = vmatprep.mubr.bf16.mxu0 0
      %799 = vmatmul.mubr.bf16.gmra.mrb[0].mxu0 %v325
      %v800 = vpop.f32.mrb[0].mxu0
      %v801 = vadd.f32 %v688, %v800
      %v802 = vpop.f32.mrb[0].mxu0
      %v803 = vadd.f32 %v690, %v802
      %v804 = vpop.f32.mrb[0].mxu0
      %v805 = vadd.f32 %v692, %v804
      %v806 = vpop.f32.mrb[0].mxu0
      %v807 = vadd.f32 %v694, %v806
      %808 = vmatprep.mubr.bf16.mxu0 0
      %809 = vmatmul.mubr.bf16.gmra.mrb[0].mxu0 %v328
      %v810 = vpop.f32.mrb[0].mxu0
      %v811 = vadd.f32 %v698, %v810
      %v812 = vpop.f32.mrb[0].mxu0
      %v813 = vadd.f32 %v700, %v812
      %v814 = vpop.f32.mrb[0].mxu0
      %v815 = vadd.f32 %v702, %v814
      %v816 = vpop.f32.mrb[0].mxu0
      %v817 = vadd.f32 %v704, %v816
      %818 = vdwg.mxu0
      %v819 = vpack.c.bf16 %v745, %v741
      %v820 = vpack.c.bf16 %v755, %v751
      %v821 = vpack.c.bf16 %v765, %v761
      %v822 = vpack.c.bf16 %v775, %v771
      %v823 = vpack.c.bf16 %v785, %v781
      %v824 = vpack.c.bf16 %v795, %v791
      %v825 = vpack.c.bf16 %v805, %v801
      %v826 = vpack.c.bf16 %v815, %v811
      %v827 = vpack.c.bf16 %v747, %v743
      %v828 = vpack.c.bf16 %v757, %v753
      %v829 = vpack.c.bf16 %v767, %v763
      %v830 = vpack.c.bf16 %v777, %v773
      %v831 = vpack.c.bf16 %v787, %v783
      %v832 = vpack.c.bf16 %v797, %v793
      %v833 = vpack.c.bf16 %v807, %v803
      %v834 = vpack.c.bf16 %v817, %v813
      %843 = vrot.lane.b32.xlu0 %v819, 64
      %v844 = vpop.permute.xlu0 %843
      %845 = vrot.lane.b32.xlu0 %v820, 64
      %v846 = vpop.permute.xlu0 %845
      %847 = vrot.lane.b32.xlu0 %v821, 64
      %v848 = vpop.permute.xlu0 %847
      %849 = vrot.lane.b32.xlu0 %v822, 64
      %v850 = vpop.permute.xlu0 %849
      %851 = vrot.lane.b32.xlu0 %v823, 64
      %v852 = vpop.permute.xlu0 %851
      %853 = vrot.lane.b32.xlu0 %v824, 64
      %v854 = vpop.permute.xlu0 %853
      %855 = vrot.lane.b32.xlu0 %v825, 64
      %v856 = vpop.permute.xlu0 %855
      %857 = vrot.lane.b32.xlu0 %v826, 64
      %v858 = vpop.permute.xlu0 %857
      %vm859 = vcmask 523264
      %v861 = vsel %vm859, %v844, 0
      %v864 = vsel %vm859, %v846, 0
      %v867 = vsel %vm859, %v848, 0
      %v870 = vsel %vm859, %v850, 0
      %v873 = vsel %vm859, %v852, 0
      %v876 = vsel %vm859, %v854, 0
      %v879 = vsel %vm859, %v856, 0
      %v882 = vsel %vm859, %v858, 0
      %v885 = vsel %vm859, %v819, 0
      %v888 = vsel %vm859, %v820, 0
      %v891 = vsel %vm859, %v821, 0
      %v894 = vsel %vm859, %v822, 0
      %v897 = vsel %vm859, %v823, 0
      %v900 = vsel %vm859, %v824, 0
      %v903 = vsel %vm859, %v825, 0
      %v906 = vsel %vm859, %v826, 0
      %908 = vmatprep.subr.bf16.mxu0 0
      %909 = vmatpush1.bf16.xpose.msra.mxu0 %v885
      %910 = vmatprep.subr.bf16.mxu0 0
      %911 = vmatpush1.bf16.xpose.msra.mxu0 %v888
      %912 = vmatprep.subr.bf16.mxu0 0
      %913 = vmatpush1.bf16.xpose.msra.mxu0 %v891
      %914 = vmatprep.subr.bf16.mxu0 0
      %915 = vmatpush1.bf16.xpose.msra.mxu0 %v894
      %916 = vmatprep.subr.bf16.mxu0 0
      %917 = vmatpush1.bf16.xpose.msra.mxu0 %v897
      %918 = vmatprep.subr.bf16.mxu0 0
      %919 = vmatpush1.bf16.xpose.msra.mxu0 %v900
      %920 = vmatprep.subr.bf16.mxu0 0
      %921 = vmatpush1.bf16.xpose.msra.mxu0 %v903
      %922 = vmatprep.subr.bf16.mxu0 0
      %923 = vmatpush1.bf16.xpose.msra.mxu0 %v906
      %924 = vmatprep.subr.bf16.mxu0 0
      %925 = vmatpush1.bf16.xpose.msra.mxu0 0
      %926 = vmatprep.subr.bf16.mxu0 0
      %927 = vmatpush1.bf16.xpose.msra.mxu0 0
      %928 = vmatprep.subr.bf16.mxu0 0
      %929 = vmatpush1.bf16.xpose.msra.mxu0 0
      %930 = vmatprep.subr.bf16.mxu0 0
      %931 = vmatpush1.bf16.xpose.msra.mxu0 0
      %932 = vmatprep.subr.bf16.mxu0 0
      %933 = vmatpush1.bf16.xpose.msra.mxu0 0
      %934 = vmatprep.subr.bf16.mxu0 0
      %935 = vmatpush1.bf16.xpose.msra.mxu0 0
      %936 = vmatprep.subr.bf16.mxu0 0
      %937 = vmatpush1.bf16.xpose.msra.mxu0 0
      %938 = vmatprep.subr.bf16.mxu0 0
      %939 = vmatpush1.bf16.xpose.msra.mxu0 0
      %940 = vmatprep.mubr.bf16.mxu0 0
      %941 = vmatmul.mubr.bf16.gmra.mrb[0].mxu0 %v861
      %v942 = vpop.f32.mrb[0].mxu0
      %v943 = vadd.f32 0.0, %v942
      %v944 = vpop.f32.mrb[0].mxu0
      %v945 = vpop.f32.mrb[0].mxu0
      %v946 = vadd.f32 0.0, %v945
      %v947 = vpop.f32.mrb[0].mxu0
      %948 = vmatprep.mubr.bf16.mxu0 0
      %949 = vmatmul.mubr.bf16.gmra.mrb[0].mxu0 %v864
      %v950 = vpop.f32.mrb[0].mxu0
      %v951 = vadd.f32 0.0, %v950
      %v952 = vpop.f32.mrb[0].mxu0
      %v953 = vpop.f32.mrb[0].mxu0
      %v954 = vadd.f32 0.0, %v953
      %v955 = vpop.f32.mrb[0].mxu0
      %956 = vmatprep.mubr.bf16.mxu0 0
      %957 = vmatmul.mubr.bf16.gmra.mrb[0].mxu0 %v867
      %v958 = vpop.f32.mrb[0].mxu0
      %v959 = vadd.f32 0.0, %v958
      %v960 = vpop.f32.mrb[0].mxu0
      %v961 = vpop.f32.mrb[0].mxu0
      %v962 = vadd.f32 0.0, %v961
      %v963 = vpop.f32.mrb[0].mxu0
      %964 = vmatprep.mubr.bf16.mxu0 0
      %965 = vmatmul.mubr.bf16.gmra.mrb[0].mxu0 %v870
      %v966 = vpop.f32.mrb[0].mxu0
      %v967 = vadd.f32 0.0, %v966
      %v968 = vpop.f32.mrb[0].mxu0
      %v969 = vpop.f32.mrb[0].mxu0
      %v970 = vadd.f32 0.0, %v969
      %v971 = vpop.f32.mrb[0].mxu0
      %972 = vmatprep.mubr.bf16.mxu0 0
      %973 = vmatmul.mubr.bf16.gmra.mrb[0].mxu0 %v873
      %v974 = vpop.f32.mrb[0].mxu0
      %v975 = vadd.f32 0.0, %v974
      %v976 = vpop.f32.mrb[0].mxu0
      %v977 = vpop.f32.mrb[0].mxu0
      %v978 = vadd.f32 0.0, %v977
      %v979 = vpop.f32.mrb[0].mxu0
      %980 = vmatprep.mubr.bf16.mxu0 0
      %981 = vmatmul.mubr.bf16.gmra.mrb[0].mxu0 %v876
      %v982 = vpop.f32.mrb[0].mxu0
      %v983 = vadd.f32 0.0, %v982
      %v984 = vpop.f32.mrb[0].mxu0
      %v985 = vpop.f32.mrb[0].mxu0
      %v986 = vadd.f32 0.0, %v985
      %v987 = vpop.f32.mrb[0].mxu0
      %988 = vmatprep.mubr.bf16.mxu0 0
      %989 = vmatmul.mubr.bf16.gmra.mrb[0].mxu0 %v879
      %v990 = vpop.f32.mrb[0].mxu0
      %v991 = vadd.f32 0.0, %v990
      %v992 = vpop.f32.mrb[0].mxu0
      %v993 = vpop.f32.mrb[0].mxu0
      %v994 = vadd.f32 0.0, %v993
      %v995 = vpop.f32.mrb[0].mxu0
      %996 = vmatprep.mubr.bf16.mxu0 0
      %997 = vmatmul.mubr.bf16.gmra.mrb[0].mxu0 %v882
      %v998 = vpop.f32.mrb[0].mxu0
      %v999 = vadd.f32 0.0, %v998
      %v1000 = vpop.f32.mrb[0].mxu0
      %v1001 = vpop.f32.mrb[0].mxu0
      %v1002 = vadd.f32 0.0, %v1001
      %v1003 = vpop.f32.mrb[0].mxu0
      %1004 = vdwg.mxu0
      %v1005 = vlaneseq
      %v1006 = vshrl.u32 %v1005, 7
      %v1007 = vadd.s32 %v1006, 8
      %v1008 = vadd.s32 %v1006, 16
      %v1009 = vadd.s32 %v1006, 24
      %v1010 = vadd.s32 %v1006, 32
      %v1011 = vadd.s32 %v1006, 40
      %v1012 = vadd.s32 %v1006, 48
      %v1013 = vadd.s32 %v1006, 56
      %v1014 = vadd.s32 %v1006, 64
      %v1015 = vadd.s32 %v1006, 72
      %v1016 = vadd.s32 %v1006, 80
      %v1017 = vadd.s32 %v1006, 88
      %v1018 = vadd.s32 %v1006, 96
      %v1019 = vadd.s32 %v1006, 104
      %v1020 = vadd.s32 %v1006, 112
      %v1021 = vadd.s32 %v1006, 120
      %v1022 = vlaneseq
      %v1023 = vand.u32 %v1022, 127
      %vm1024 = vcmp.le.s32.totalorder %v1023, %v1006
      %vm1025 = vcmp.le.s32.totalorder %v1023, %v1007
      %vm1026 = vcmp.le.s32.totalorder %v1023, %v1008
      %vm1027 = vcmp.le.s32.totalorder %v1023, %v1009
      %vm1028 = vcmp.le.s32.totalorder %v1023, %v1010
      %vm1029 = vcmp.le.s32.totalorder %v1023, %v1011
      %vm1030 = vcmp.le.s32.totalorder %v1023, %v1012
      %vm1031 = vcmp.le.s32.totalorder %v1023, %v1013
      %vm1032 = vcmp.le.s32.totalorder %v1023, %v1014
      %vm1033 = vcmp.le.s32.totalorder %v1023, %v1015
      %vm1034 = vcmp.le.s32.totalorder %v1023, %v1016
      %vm1035 = vcmp.le.s32.totalorder %v1023, %v1017
      %vm1036 = vcmp.le.s32.totalorder %v1023, %v1018
      %vm1037 = vcmp.le.s32.totalorder %v1023, %v1019
      %vm1038 = vcmp.le.s32.totalorder %v1023, %v1020
      %vm1039 = vcmp.le.s32.totalorder %v1023, %v1021
      %v1040 = vsel %vm1024, %v943, -inf
      %v1041 = vsel %vm1025, %v946, -inf
      %v1042 = vsel %vm1026, %v951, -inf
      %v1043 = vsel %vm1027, %v954, -inf
      %v1044 = vsel %vm1028, %v959, -inf
      %v1045 = vsel %vm1029, %v962, -inf
      %v1046 = vsel %vm1030, %v967, -inf
      %v1047 = vsel %vm1031, %v970, -inf
      %v1048 = vsel %vm1032, %v975, -inf
      %v1049 = vsel %vm1033, %v978, -inf
      %v1050 = vsel %vm1034, %v983, -inf
      %v1051 = vsel %vm1035, %v986, -inf
      %v1052 = vsel %vm1036, %v991, -inf
      %v1053 = vsel %vm1037, %v994, -inf
      %v1054 = vsel %vm1038, %v999, -inf
      %v1055 = vsel %vm1039, %v1002, -inf
      %1056 = vmax.xlane.f32.xlu0 %v1040
      %v1057 = vpop.xlane.xlu0 %1056
      %1058 = vmax.xlane.f32.xlu0 %v1041
      %v1059 = vpop.xlane.xlu0 %1058
      %1060 = vmax.xlane.f32.xlu0 %v1042
      %v1061 = vpop.xlane.xlu0 %1060
      %1062 = vmax.xlane.f32.xlu0 %v1043
      %v1063 = vpop.xlane.xlu0 %1062
      %1064 = vmax.xlane.f32.xlu0 %v1044
      %v1065 = vpop.xlane.xlu0 %1064
      %1066 = vmax.xlane.f32.xlu0 %v1045
      %v1067 = vpop.xlane.xlu0 %1066
      %1068 = vmax.xlane.f32.xlu0 %v1046
      %v1069 = vpop.xlane.xlu0 %1068
      %1070 = vmax.xlane.f32.xlu0 %v1047
      %v1071 = vpop.xlane.xlu0 %1070
      %1072 = vmax.xlane.f32.xlu0 %v1048
      %v1073 = vpop.xlane.xlu0 %1072
      %1074 = vmax.xlane.f32.xlu0 %v1049
      %v1075 = vpop.xlane.xlu0 %1074
      %1076 = vmax.xlane.f32.xlu0 %v1050
      %v1077 = vpop.xlane.xlu0 %1076
      %1078 = vmax.xlane.f32.xlu0 %v1051
      %v1079 = vpop.xlane.xlu0 %1078
      %1080 = vmax.xlane.f32.xlu0 %v1052
      %v1081 = vpop.xlane.xlu0 %1080
      %1082 = vmax.xlane.f32.xlu0 %v1053
      %v1083 = vpop.xlane.xlu0 %1082
      %1084 = vmax.xlane.f32.xlu0 %v1054
      %v1085 = vpop.xlane.xlu0 %1084
      %1086 = vmax.xlane.f32.xlu0 %v1055
      %v1087 = vpop.xlane.xlu0 %1086
      %v1088 = vsub.f32 %v1040, %v1057
      %v1089 = vsub.f32 %v1041, %v1059
      %v1090 = vsub.f32 %v1042, %v1061
      %v1091 = vsub.f32 %v1043, %v1063
      %v1092 = vsub.f32 %v1044, %v1065
      %v1093 = vsub.f32 %v1045, %v1067
      %v1094 = vsub.f32 %v1046, %v1069
      %v1095 = vsub.f32 %v1047, %v1071
      %v1096 = vsub.f32 %v1048, %v1073
      %v1097 = vsub.f32 %v1049, %v1075
      %v1098 = vsub.f32 %v1050, %v1077
      %v1099 = vsub.f32 %v1051, %v1079
      %v1100 = vsub.f32 %v1052, %v1081
      %v1101 = vsub.f32 %v1053, %v1083
      %v1102 = vsub.f32 %v1054, %v1085
      %v1103 = vsub.f32 %v1055, %v1087
      %v1104 = vmul.f32 %v1088, 1.442695
      %v1105 = vpow.pop %v1104
      %v1106 = vmul.f32 %v1089, 1.442695
      %v1107 = vpow.pop %v1106
      %v1108 = vmul.f32 %v1090, 1.442695
      %v1109 = vpow.pop %v1108
      %v1110 = vmul.f32 %v1091, 1.442695
      %v1111 = vpow.pop %v1110
      %v1112 = vmul.f32 %v1092, 1.442695
      %v1113 = vpow.pop %v1112
      %v1114 = vmul.f32 %v1093, 1.442695
      %v1115 = vpow.pop %v1114
      %v1116 = vmul.f32 %v1094, 1.442695
      %v1117 = vpow.pop %v1116
      %v1118 = vmul.f32 %v1095, 1.442695
      %v1119 = vpow.pop %v1118
      %v1120 = vmul.f32 %v1096, 1.442695
      %v1121 = vpow.pop %v1120
      %v1122 = vmul.f32 %v1097, 1.442695
      %v1123 = vpow.pop %v1122
      %v1124 = vmul.f32 %v1098, 1.442695
      %v1125 = vpow.pop %v1124
      %v1126 = vmul.f32 %v1099, 1.442695
      %v1127 = vpow.pop %v1126
      %v1128 = vmul.f32 %v1100, 1.442695
      %v1129 = vpow.pop %v1128
      %v1130 = vmul.f32 %v1101, 1.442695
      %v1131 = vpow.pop %v1130
      %v1132 = vmul.f32 %v1102, 1.442695
      %v1133 = vpow.pop %v1132
      %v1134 = vmul.f32 %v1103, 1.442695
      %v1135 = vpow.pop %v1134
      %1136 = vadd.xlane.f32.xlu0 %v1105
      %v1137 = vpop.xlane.xlu0 %1136
      %1138 = vadd.xlane.f32.xlu0 %v1107
      %v1139 = vpop.xlane.xlu0 %1138
      %1140 = vadd.xlane.f32.xlu0 %v1109
      %v1141 = vpop.xlane.xlu0 %1140
      %1142 = vadd.xlane.f32.xlu0 %v1111
      %v1143 = vpop.xlane.xlu0 %1142
      %1144 = vadd.xlane.f32.xlu0 %v1113
      %v1145 = vpop.xlane.xlu0 %1144
      %1146 = vadd.xlane.f32.xlu0 %v1115
      %v1147 = vpop.xlane.xlu0 %1146
      %1148 = vadd.xlane.f32.xlu0 %v1117
      %v1149 = vpop.xlane.xlu0 %1148
      %1150 = vadd.xlane.f32.xlu0 %v1119
      %v1151 = vpop.xlane.xlu0 %1150
      %1152 = vadd.xlane.f32.xlu0 %v1121
      %v1153 = vpop.xlane.xlu0 %1152
      %1154 = vadd.xlane.f32.xlu0 %v1123
      %v1155 = vpop.xlane.xlu0 %1154
      %1156 = vadd.xlane.f32.xlu0 %v1125
      %v1157 = vpop.xlane.xlu0 %1156
      %1158 = vadd.xlane.f32.xlu0 %v1127
      %v1159 = vpop.xlane.xlu0 %1158
      %1160 = vadd.xlane.f32.xlu0 %v1129
      %v1161 = vpop.xlane.xlu0 %1160
      %1162 = vadd.xlane.f32.xlu0 %v1131
      %v1163 = vpop.xlane.xlu0 %1162
      %1164 = vadd.xlane.f32.xlu0 %v1133
      %v1165 = vpop.xlane.xlu0 %1164
      %1166 = vadd.xlane.f32.xlu0 %v1135
      %v1167 = vpop.xlane.xlu0 %1166
      %v1168 = vrcp.pop %v1137
      %v1169 = vrcp.pop %v1139
      %v1170 = vrcp.pop %v1141
      %v1171 = vrcp.pop %v1143
      %v1172 = vrcp.pop %v1145
      %v1173 = vrcp.pop %v1147
      %v1174 = vrcp.pop %v1149
      %v1175 = vrcp.pop %v1151
      %v1176 = vrcp.pop %v1153
      %v1177 = vrcp.pop %v1155
      %v1178 = vrcp.pop %v1157
      %v1179 = vrcp.pop %v1159
      %v1180 = vrcp.pop %v1161
      %v1181 = vrcp.pop %v1163
      %v1182 = vrcp.pop %v1165
      %v1183 = vrcp.pop %v1167
      %v1184 = vmul.f32 %v1105, %v1168
      %v1185 = vmul.f32 %v1107, %v1169
      %v1186 = vmul.f32 %v1109, %v1170
      %v1187 = vmul.f32 %v1111, %v1171
      %v1188 = vmul.f32 %v1113, %v1172
      %v1189 = vmul.f32 %v1115, %v1173
      %v1190 = vmul.f32 %v1117, %v1174
      %v1191 = vmul.f32 %v1119, %v1175
      %v1192 = vmul.f32 %v1121, %v1176
      %v1193 = vmul.f32 %v1123, %v1177
      %v1194 = vmul.f32 %v1125, %v1178
      %v1195 = vmul.f32 %v1127, %v1179
      %v1196 = vmul.f32 %v1129, %v1180
      %v1197 = vmul.f32 %v1131, %v1181
      %v1198 = vmul.f32 %v1133, %v1182
      %v1199 = vmul.f32 %v1135, %v1183
      %v1200 = vpack.c.bf16 %v1185, %v1184
      %v1201 = vpack.c.bf16 %v1187, %v1186
      %v1202 = vpack.c.bf16 %v1189, %v1188
      %v1203 = vpack.c.bf16 %v1191, %v1190
      %v1204 = vpack.c.bf16 %v1193, %v1192
      %v1205 = vpack.c.bf16 %v1195, %v1194
      %v1206 = vpack.c.bf16 %v1197, %v1196
      %v1207 = vpack.c.bf16 %v1199, %v1198
      %1208 = vmatprep.subr.bf16.mxu0 0
      %1209 = vmatpush1.bf16.msra.mxu0 %v827
      %1210 = vmatprep.subr.bf16.mxu0 0
      %1211 = vmatpush1.bf16.msra.mxu0 %v828
      %1212 = vmatprep.subr.bf16.mxu0 0
      %1213 = vmatpush1.bf16.msra.mxu0 %v829
      %1214 = vmatprep.subr.bf16.mxu0 0
      %1215 = vmatpush1.bf16.msra.mxu0 %v830
      %1216 = vmatprep.subr.bf16.mxu0 0
      %1217 = vmatpush1.bf16.msra.mxu0 %v831
      %1218 = vmatprep.subr.bf16.mxu0 0
      %1219 = vmatpush1.bf16.msra.mxu0 %v832
      %1220 = vmatprep.subr.bf16.mxu0 0
      %1221 = vmatpush1.bf16.msra.mxu0 %v833
      %1222 = vmatprep.subr.bf16.mxu0 0
      %1223 = vmatpush1.bf16.msra.mxu0 %v834
      %1224 = vmatprep.subr.bf16.mxu0 0
      %1225 = vmatpush1.bf16.msra.mxu0 0
      %1226 = vmatprep.subr.bf16.mxu0 0
      %1227 = vmatpush1.bf16.msra.mxu0 0
      %1228 = vmatprep.subr.bf16.mxu0 0
      %1229 = vmatpush1.bf16.msra.mxu0 0
      %1230 = vmatprep.subr.bf16.mxu0 0
      %1231 = vmatpush1.bf16.msra.mxu0 0
      %1232 = vmatprep.subr.bf16.mxu0 0
      %1233 = vmatpush1.bf16.msra.mxu0 0
      %1234 = vmatprep.subr.bf16.mxu0 0
      %1235 = vmatpush1.bf16.msra.mxu0 0
      %1236 = vmatprep.subr.bf16.mxu0 0
      %1237 = vmatpush1.bf16.msra.mxu0 0
      %1238 = vmatprep.subr.bf16.mxu0 0
      %1239 = vmatpush1.bf16.msra.mxu0 0
      %1240 = vmatprep.mubr.bf16.mxu0 0
      %1241 = vmatmul.mubr.bf16.gmra.mrb[0].mxu0 %v1200
      %v1242 = vpop.f32.mrb[0].mxu0
      %v1243 = vadd.f32 0.0, %v1242
      %v1244 = vpop.f32.mrb[0].mxu0
      %v1245 = vpop.f32.mrb[0].mxu0
      %v1246 = vadd.f32 0.0, %v1245
      %v1247 = vpop.f32.mrb[0].mxu0
      %1248 = vmatprep.mubr.bf16.mxu0 0
      %1249 = vmatmul.mubr.bf16.gmra.mrb[0].mxu0 %v1201
      %v1250 = vpop.f32.mrb[0].mxu0
      %v1251 = vadd.f32 0.0, %v1250
      %v1252 = vpop.f32.mrb[0].mxu0
      %v1253 = vpop.f32.mrb[0].mxu0
      %v1254 = vadd.f32 0.0, %v1253
      %v1255 = vpop.f32.mrb[0].mxu0
      %1256 = vmatprep.mubr.bf16.mxu0 0
      %1257 = vmatmul.mubr.bf16.gmra.mrb[0].mxu0 %v1202
      %v1258 = vpop.f32.mrb[0].mxu0
      %v1259 = vadd.f32 0.0, %v1258
      %v1260 = vpop.f32.mrb[0].mxu0
      %v1261 = vpop.f32.mrb[0].mxu0
      %v1262 = vadd.f32 0.0, %v1261
      %v1263 = vpop.f32.mrb[0].mxu0
      %1264 = vmatprep.mubr.bf16.mxu0 0
      %1265 = vmatmul.mubr.bf16.gmra.mrb[0].mxu0 %v1203
      %v1266 = vpop.f32.mrb[0].mxu0
      %v1267 = vadd.f32 0.0, %v1266
      %v1268 = vpop.f32.mrb[0].mxu0
      %v1269 = vpop.f32.mrb[0].mxu0
      %v1270 = vadd.f32 0.0, %v1269
      %v1271 = vpop.f32.mrb[0].mxu0
      %1272 = vmatprep.mubr.bf16.mxu0 0
      %1273 = vmatmul.mubr.bf16.gmra.mrb[0].mxu0 %v1204
      %v1274 = vpop.f32.mrb[0].mxu0
      %v1275 = vadd.f32 0.0, %v1274
      %v1276 = vpop.f32.mrb[0].mxu0
      %v1277 = vpop.f32.mrb[0].mxu0
      %v1278 = vadd.f32 0.0, %v1277
      %v1279 = vpop.f32.mrb[0].mxu0
      %1280 = vmatprep.mubr.bf16.mxu0 0
      %1281 = vmatmul.mubr.bf16.gmra.mrb[0].mxu0 %v1205
      %v1282 = vpop.f32.mrb[0].mxu0
      %v1283 = vadd.f32 0.0, %v1282
      %v1284 = vpop.f32.mrb[0].mxu0
      %v1285 = vpop.f32.mrb[0].mxu0
      %v1286 = vadd.f32 0.0, %v1285
      %v1287 = vpop.f32.mrb[0].mxu0
      %1288 = vmatprep.mubr.bf16.mxu0 0
      %1289 = vmatmul.mubr.bf16.gmra.mrb[0].mxu0 %v1206
      %v1290 = vpop.f32.mrb[0].mxu0
      %v1291 = vadd.f32 0.0, %v1290
      %v1292 = vpop.f32.mrb[0].mxu0
      %v1293 = vpop.f32.mrb[0].mxu0
      %v1294 = vadd.f32 0.0, %v1293
      %v1295 = vpop.f32.mrb[0].mxu0
      %1296 = vmatprep.mubr.bf16.mxu0 0
      %1297 = vmatmul.mubr.bf16.gmra.mrb[0].mxu0 %v1207
      %v1298 = vpop.f32.mrb[0].mxu0
      %v1299 = vadd.f32 0.0, %v1298
      %v1300 = vpop.f32.mrb[0].mxu0
      %v1301 = vpop.f32.mrb[0].mxu0
      %v1302 = vadd.f32 0.0, %v1301
      %v1303 = vpop.f32.mrb[0].mxu0
      %1304 = vdwg.mxu0
      %1305 = vst.msk [vmem:[%s143] sm:$0xff] %vm859, %v1243
      %1306 = vst.msk [vmem:[%s143 + $0x8] sm:$0xff] %vm859, %v1246
      %1307 = vst.msk [vmem:[%s143 + $0x10] sm:$0xff] %vm859, %v1251
      %1308 = vst.msk [vmem:[%s143 + $0x18] sm:$0xff] %vm859, %v1254
      %1309 = vst.msk [vmem:[%s143 + $0x20] sm:$0xff] %vm859, %v1259
      %1310 = vst.msk [vmem:[%s143 + $0x28] sm:$0xff] %vm859, %v1262
      %1311 = vst.msk [vmem:[%s143 + $0x30] sm:$0xff] %vm859, %v1267
      %1312 = vst.msk [vmem:[%s143 + $0x38] sm:$0xff] %vm859, %v1270
      %1313 = vst.msk [vmem:[%s143 + $0x40] sm:$0xff] %vm859, %v1275
      %1314 = vst.msk [vmem:[%s143 + $0x48] sm:$0xff] %vm859, %v1278
      %1315 = vst.msk [vmem:[%s143 + $0x50] sm:$0xff] %vm859, %v1283
      %1316 = vst.msk [vmem:[%s143 + $0x58] sm:$0xff] %vm859, %v1286
      %1317 = vst.msk [vmem:[%s143 + $0x60] sm:$0xff] %vm859, %v1291
      %1318 = vst.msk [vmem:[%s143 + $0x68] sm:$0xff] %vm859, %v1294
      %1319 = vst.msk [vmem:[%s143 + $0x70] sm:$0xff] %vm859, %v1299
      %1320 = vst.msk [vmem:[%s143 + $0x78] sm:$0xff] %vm859, %v1302
      %p1321 = scmp.lt.s32.totalorder %s13, 1
      %s1322 = scalar_select %p1321, %s13, 1
      %s1323 = smul.addr %s1322, 16
      %s1324 = smul.addr %s1323, 8
      %s1325 = scalar_lea.vmem %s2, %s1324
      // Predicated region
      $region29: #{tpu_custom_call.1} parent=27 // pred_check
        %p1326 = pneg %p78
      $region30: #{tpu_custom_call.1} parent=27 // pred_check_branch
        %1328 = sbr.rel (%p1326) target = $region32
      $region31: #{tpu_custom_call.1} parent=27 // pred_region
        _
      $region32: #{tpu_custom_call.1} parent=27 // pred_fallthru
        _
    $region28: #{tpu_custom_call.1} parent=5 // pred_fallthru
      _
    %p1329 = scmp.le.s32.totalorder 2, %s8
    // Predicated region
    $region33: #{tpu_custom_call.1} parent=5 // pred_check
      %p1330 = pneg %p1329
    $region34: #{tpu_custom_call.1} parent=5 // pred_check_branch
      %1332 = sbr.rel (%p1330) target = $region36
    $region35: #{tpu_custom_call.1} parent=5 // pred_region
      %s1333 = ssub.s32 %s8, 2
      // Predicated region
      $region37: #{tpu_custom_call.1} parent=35 // pred_check
        %p1334 = pneg %p84
      $region38: #{tpu_custom_call.1} parent=35 // pred_check_branch
        %1336 = sbr.rel (%p1334) target = $region40
      $region39: #{tpu_custom_call.1} parent=35 // pred_region
        %p1337 = scmp.lt.s32.totalorder %s14, 1
        %s1338 = scalar_select %p1337, %s14, 1
        %s1339 = smul.addr %s1338, 16
        %s1340 = smul.addr %s1339, 8
        %s1341 = scalar_lea.vmem %s2, %s1340
      $region40: #{tpu_custom_call.1} parent=35 // pred_fallthru
        _
    $region36: #{tpu_custom_call.1} parent=5 // pred_fallthru
      _
  $region6: #{tpu_custom_call.1} parent=0 // loop_footer
    %s12 = sadd.s32 1, %s8
  $region7: #{tpu_custom_call.1} parent=0 // loop_footer_branch
    %7 = sbr.rel target = $region3
  $region8: #{tpu_custom_call.1} parent=0 // loop_exit
    _

</llo_original>
